<compile_context>
chip_gen: v5e
topology: v5e:2x2
jax: 0.10.0
libtpu: 0.0.40
codegen_flags: <defaults>
</compile_context>

<pallas_src>
import math
import jax
import jax.numpy as jnp
from jax.experimental import pallas as pl
from jax.experimental.pallas import tpu as pltpu

MASK_VALUE = -1e30


def weighted_pool_kernel(x_ref, mask_ref, w_ref, o_ref, m_scr, s_scr, acc_scr):
    li = pl.program_id(1)          # sequence-tile index (reduction axis, innermost)

    @pl.when(li == 0)
    def _init():
        m_scr[...] = jnp.full_like(m_scr, -jnp.inf)
        s_scr[...] = jnp.zeros_like(s_scr)
        acc_scr[...] = jnp.zeros_like(acc_scr)

    x = x_ref[...]                                      # (TB, TL, D)
    msk = mask_ref[...].astype(jnp.float32)             # (TB, 1, TL)  lane-dense
    tb, _, d = x.shape
    w = jnp.broadcast_to(w_ref[...], (tb, 1, d)).astype(x.dtype)   # (TB, 1, D)

    # logits on the MXU: alpha[b, 0, t] = x[b, t, :] . w
    alpha = jnp.einsum("bqd,btd->bqt", w, x,
                       preferred_element_type=jnp.float32)          # (TB, 1, TL)
    alpha = alpha + (1.0 - msk) * MASK_VALUE

    # online softmax over the (tiled) sequence axis
    m_prev = m_scr[...]                                              # (TB, 1, 1)
    m_new = jnp.maximum(m_prev, jnp.max(alpha, axis=-1, keepdims=True))
    corr = jnp.exp(m_prev - m_new)                                   # (TB, 1, 1)
    p = jnp.exp(alpha - m_new)                                       # (TB, 1, TL)

    s_scr[...] = corr * s_scr[...] + jnp.sum(p, axis=-1, keepdims=True)
    # pooled partial sum on the MXU (no (TL, D) f32 temporary on the VPU/XLU)
    acc_scr[...] = corr * acc_scr[...] + jnp.einsum(
        "bqt,btd->bqd", p.astype(x.dtype), x,
        preferred_element_type=jnp.float32)                          # (TB, 1, D)
    m_scr[...] = m_new

    @pl.when(li == pl.num_programs(1) - 1)
    def _finalize():
        s = s_scr[...]
        inv = pl.reciprocal(s, approx=True)      # EUP slot (otherwise idle)
        inv = inv * (2.0 - s * inv)              # one Newton step -> ~f32 exact
        o_ref[...] = (acc_scr[...] * inv).astype(o_ref.dtype)


def _pick_tiles(B, L, D, itemsize, budget_bytes=12 << 20):
    """Pick (TB, TL).  TB/TL are leading / second-to-last dims of the x block,
    TL is also the lane dim of the mask block, so TL must be a multiple of 128
    or equal to L.  Keep 2x (double-buffered) x tiles well under the scoped
    VMEM limit; fall back to the whole axis when nothing divides."""
    tb = next((c for c in (64, 32, 16, 8, 4, 2) if B % c == 0), B)
    tl = L
    for c in (4096, 2048, 1024, 512, 256, 128):
        if L % c == 0 and 2 * tb * c * D * itemsize <= budget_bytes:
            tl = c
            break
    return tb, tl


def weighted_pool(x, mask, weight, *, vmem_limit_bytes=32 * 1024 * 1024):
    """x: (B, L, D), mask: (B, L), weight: (D, 1)  ->  (B, D)."""
    B, L, D = x.shape
    assert mask.shape == (B, L)
    assert weight.shape == (D, 1)

    tb, tl = _pick_tiles(B, L, D, jnp.dtype(x.dtype).itemsize)

    mask3 = mask.reshape(B, 1, L).astype(jnp.float32)     # lane-dense along L
    w3 = weight.reshape(1, 1, D).astype(x.dtype)          # lane-dense weight row

    grid = (B // tb, L // tl)

    out = pl.pallas_call(
        weighted_pool_kernel,
        out_shape=jax.ShapeDtypeStruct((B, 1, D), x.dtype),
        grid_spec=pltpu.PrefetchScalarGridSpec(
            num_scalar_prefetch=0,
            grid=grid,
            in_specs=[
                pl.BlockSpec((tb, tl, D), lambda b, l: (b, l, 0)),   # x
                pl.BlockSpec((tb, 1, tl), lambda b, l: (b, 0, l)),   # mask
                pl.BlockSpec((1, 1, D), lambda b, l: (0, 0, 0)),     # weight
            ],
            out_specs=pl.BlockSpec((tb, 1, D), lambda b, l: (b, 0, 0)),
            scratch_shapes=[
                pltpu.VMEM((tb, 1, 1), jnp.float32),   # running max
                pltpu.VMEM((tb, 1, 1), jnp.float32),   # running sum
                pltpu.VMEM((tb, 1, D), jnp.float32),   # pooled accumulator
            ],
        ),
        compiler_params=pltpu.CompilerParams(
            dimension_semantics=("parallel", "arbitrary"),
            vmem_limit_bytes=vmem_limit_bytes,
        ),
    )(x, mask3, w3)
    return out.reshape(B, D)      # free reshape in the wrapper


def reference(x, mask, weight):
    alpha = jnp.einsum("bld,do->blo", x, weight)                 # (B, L, 1)
    alpha = alpha + (1.0 - mask[..., None].astype(jnp.float32)) * MASK_VALUE
    alphas = jax.nn.softmax(alpha, axis=1)                       # (B, L, 1)
    pooled = jnp.einsum("bld,blo->bdo", x, alphas)[..., 0]       # (B, D)
    return pooled


if __name__ == "__main__":
    B, L, D = 2, 8, 32
    key = jax.random.PRNGKey(0)
    kx, km, kw = jax.random.split(key, 3)

    x = jax.random.normal(kx, (B, L, D), dtype=jnp.float32)

    # mask: 1 for valid tokens, 0 for padded (make some positions padded)
    lengths = jnp.array([L, L - 3])
    mask = (jnp.arange(L)[None, :] < lengths[:, None]).astype(jnp.float32)

    # Xavier-uniform init for weight of shape (D, 1): bound = sqrt(6/(D+1))
    bound = math.sqrt(6.0 / (D + 1))
    weight = jax.random.uniform(kw, (D, 1), minval=-bound, maxval=bound,
                                dtype=jnp.float32)

    out = jax.block_until_ready(weighted_pool(x, mask, weight))

    ref = reference(x, mask, weight)
    assert out.shape == (B, D)
    assert jnp.allclose(out, ref, atol=1e-5, rtol=1e-5)

    print("KERNEL_OK")
</pallas_src>

<mosaic_0001>
module attributes {stable_mosaic.version = 11 : i64} {
  func.func @weighted_pool_kernel(%arg0: i32, %arg1: i32, %arg2: memref<2x8x32xf32, #tpu.memory_space<vmem>>, %arg3: memref<2x1x8xf32, #tpu.memory_space<vmem>>, %arg4: memref<1x1x32xf32, #tpu.memory_space<vmem>>, %arg5: memref<2x1x32xf32, #tpu.memory_space<vmem>>, %arg6: memref<2x1x1xf32, #tpu.memory_space<vmem>>, %arg7: memref<2x1x1xf32, #tpu.memory_space<vmem>>, %arg8: memref<2x1x32xf32, #tpu.memory_space<vmem>>) attributes {dimension_semantics = [#tpu.dimension_semantics<parallel>, #tpu.dimension_semantics<arbitrary>], iteration_bounds = array<i64: 1, 1>, scalar_prefetch = 0 : i64, scratch_operands = 3 : i64, tpu.core_type = #tpu.core_type<tc>, window_params = [{transform_indices = @transform_0, window_bounds = array<i64: 2, 8, 32>}, {transform_indices = @transform_1, window_bounds = array<i64: 2, 1, 8>}, {pipeline_mode = #tpu.pipeline_mode<synchronous>, transform_indices = @transform_2, window_bounds = array<i64: 1, 1, 32>}, {transform_indices = @transform_3, window_bounds = array<i64: 2, 1, 32>}]} {
    %c0_i32 = arith.constant 0 : i32
    %0 = arith.cmpi eq, %arg1, %c0_i32 : i32
    %1 = arith.extui %0 : i1 to i32
    %c0_i32_0 = arith.constant 0 : i32
    %2 = arith.cmpi ne, %1, %c0_i32_0 : i32
    scf.if %2 {
      %cst_34 = arith.constant 0xFF800000 : f32
      %39 = vector.broadcast %cst_34 : f32 to vector<2x1x1xf32>
      %c0_35 = arith.constant 0 : index
      %c0_36 = arith.constant 0 : index
      %c0_37 = arith.constant 0 : index
      %40 = vector.load %arg6[%c0_35, %c0_36, %c0_37] : memref<2x1x1xf32, #tpu.memory_space<vmem>>, vector<2x1x1xf32>
      tpu.vector_store %arg6[%c0_35, %c0_36, %c0_37], %39 {strides = array<i32>} : memref<2x1x1xf32, #tpu.memory_space<vmem>>, vector<2x1x1xf32>,
      %cst_38 = arith.constant 0.000000e+00 : f32
      %41 = vector.broadcast %cst_38 : f32 to vector<2x1x1xf32>
      %c0_39 = arith.constant 0 : index
      %c0_40 = arith.constant 0 : index
      %c0_41 = arith.constant 0 : index
      %42 = vector.load %arg7[%c0_39, %c0_40, %c0_41] : memref<2x1x1xf32, #tpu.memory_space<vmem>>, vector<2x1x1xf32>
      tpu.vector_store %arg7[%c0_39, %c0_40, %c0_41], %41 {strides = array<i32>} : memref<2x1x1xf32, #tpu.memory_space<vmem>>, vector<2x1x1xf32>,
      %cst_42 = arith.constant 0.000000e+00 : f32
      %43 = vector.broadcast %cst_42 : f32 to vector<2x1x32xf32>
      %c0_43 = arith.constant 0 : index
      %c0_44 = arith.constant 0 : index
      %c0_45 = arith.constant 0 : index
      %44 = vector.load %arg8[%c0_43, %c0_44, %c0_45] : memref<2x1x32xf32, #tpu.memory_space<vmem>>, vector<2x1x32xf32>
      tpu.vector_store %arg8[%c0_43, %c0_44, %c0_45], %43 {strides = array<i32>} : memref<2x1x32xf32, #tpu.memory_space<vmem>>, vector<2x1x32xf32>,
    } else {
    }
    %c0 = arith.constant 0 : index
    %c0_1 = arith.constant 0 : index
    %c0_2 = arith.constant 0 : index
    %3 = vector.load %arg2[%c0, %c0_1, %c0_2] : memref<2x8x32xf32, #tpu.memory_space<vmem>>, vector<2x8x32xf32>
    %c0_3 = arith.constant 0 : index
    %c0_4 = arith.constant 0 : index
    %c0_5 = arith.constant 0 : index
    %4 = vector.load %arg3[%c0_3, %c0_4, %c0_5] : memref<2x1x8xf32, #tpu.memory_space<vmem>>, vector<2x1x8xf32>
    %c0_6 = arith.constant 0 : index
    %c0_7 = arith.constant 0 : index
    %c0_8 = arith.constant 0 : index
    %5 = vector.load %arg4[%c0_6, %c0_7, %c0_8] : memref<1x1x32xf32, #tpu.memory_space<vmem>>, vector<1x1x32xf32>
    %6 = vector.shape_cast %5 : vector<1x1x32xf32> to vector<1x1x32xf32>
    %7 = vector.broadcast %6 : vector<1x1x32xf32> to vector<2x1x32xf32>
    "tpu.trace_start"() <{level = 10 : i32, message = "bqd,btd->bqt"}> : () -> ()
    %cst = arith.constant dense<0.000000e+00> : vector<2x1x8xf32>
    %8 = tpu.matmul %7, %3, %cst {dimension_numbers = #tpu.dot_dimension_numbers<[2], [2], [1], [1], [0, 0, 0, 1, 1, 1], [0], [0]>} : vector<2x1x32xf32>, vector<2x8x32xf32>, vector<2x1x8xf32> -> vector<2x1x8xf32>
    "tpu.trace_stop"() : () -> ()
    %cst_9 = arith.constant 1.000000e+00 : f32
    %9 = vector.broadcast %cst_9 : f32 to vector<2x1x8xf32>
    %10 = arith.subf %9, %4 : vector<2x1x8xf32>
    %cst_10 = arith.constant -1.000000e+30 : f32
    %11 = vector.broadcast %cst_10 : f32 to vector<2x1x8xf32>
    %12 = arith.mulf %10, %11 : vector<2x1x8xf32>
    %13 = arith.addf %8, %12 : vector<2x1x8xf32>
    %c0_11 = arith.constant 0 : index
    %c0_12 = arith.constant 0 : index
    %c0_13 = arith.constant 0 : index
    %14 = vector.load %arg6[%c0_11, %c0_12, %c0_13] : memref<2x1x1xf32, #tpu.memory_space<vmem>>, vector<2x1x1xf32>
    %cst_14 = arith.constant dense<0xFF800000> : vector<2x1xf32>
    %15 = vector.multi_reduction <maximumf>, %13, %cst_14 [2] : vector<2x1x8xf32> to vector<2x1xf32>
    %16 = vector.shape_cast %15 : vector<2x1xf32> to vector<2x1x1xf32>
    %17 = arith.maximumf %14, %16 : vector<2x1x1xf32>
    %18 = arith.subf %14, %17 : vector<2x1x1xf32>
    %19 = math.exp %18 : vector<2x1x1xf32>
    %20 = vector.broadcast %17 : vector<2x1x1xf32> to vector<2x1x8xf32>
    %21 = arith.subf %13, %20 : vector<2x1x8xf32>
    %22 = math.exp %21 : vector<2x1x8xf32>
    %c0_15 = arith.constant 0 : index
    %c0_16 = arith.constant 0 : index
    %c0_17 = arith.constant 0 : index
    %23 = vector.load %arg7[%c0_15, %c0_16, %c0_17] : memref<2x1x1xf32, #tpu.memory_space<vmem>>, vector<2x1x1xf32>
    %24 = arith.mulf %19, %23 : vector<2x1x1xf32>
    %cst_18 = arith.constant dense<0.000000e+00> : vector<2x1xf32>
    %25 = vector.multi_reduction <add>, %22, %cst_18 [2] : vector<2x1x8xf32> to vector<2x1xf32>
    %26 = vector.shape_cast %25 : vector<2x1xf32> to vector<2x1x1xf32>
    %27 = arith.addf %24, %26 : vector<2x1x1xf32>
    %c0_19 = arith.constant 0 : index
    %c0_20 = arith.constant 0 : index
    %c0_21 = arith.constant 0 : index
    %28 = vector.load %arg7[%c0_19, %c0_20, %c0_21] : memref<2x1x1xf32, #tpu.memory_space<vmem>>, vector<2x1x1xf32>
    tpu.vector_store %arg7[%c0_19, %c0_20, %c0_21], %27 {strides = array<i32>} : memref<2x1x1xf32, #tpu.memory_space<vmem>>, vector<2x1x1xf32>,
    %c0_22 = arith.constant 0 : index
    %c0_23 = arith.constant 0 : index
    %c0_24 = arith.constant 0 : index
    %29 = vector.load %arg8[%c0_22, %c0_23, %c0_24] : memref<2x1x32xf32, #tpu.memory_space<vmem>>, vector<2x1x32xf32>
    %30 = vector.broadcast %19 : vector<2x1x1xf32> to vector<2x1x32xf32>
    %31 = arith.mulf %30, %29 : vector<2x1x32xf32>
    "tpu.trace_start"() <{level = 10 : i32, message = "bqt,btd->bqd"}> : () -> ()
    %cst_25 = arith.constant dense<0.000000e+00> : vector<2x1x32xf32>
    %32 = tpu.matmul %22, %3, %cst_25 {dimension_numbers = #tpu.dot_dimension_numbers<[2], [1], [1], [2], [0, 0, 0, 1, 1, 2], [0], [0]>} : vector<2x1x8xf32>, vector<2x8x32xf32>, vector<2x1x32xf32> -> vector<2x1x32xf32>
    "tpu.trace_stop"() : () -> ()
    %33 = arith.addf %31, %32 : vector<2x1x32xf32>
    %c0_26 = arith.constant 0 : index
    %c0_27 = arith.constant 0 : index
    %c0_28 = arith.constant 0 : index
    %34 = vector.load %arg8[%c0_26, %c0_27, %c0_28] : memref<2x1x32xf32, #tpu.memory_space<vmem>>, vector<2x1x32xf32>
    tpu.vector_store %arg8[%c0_26, %c0_27, %c0_28], %33 {strides = array<i32>} : memref<2x1x32xf32, #tpu.memory_space<vmem>>, vector<2x1x32xf32>,
    %c0_29 = arith.constant 0 : index
    %c0_30 = arith.constant 0 : index
    %c0_31 = arith.constant 0 : index
    %35 = vector.load %arg6[%c0_29, %c0_30, %c0_31] : memref<2x1x1xf32, #tpu.memory_space<vmem>>, vector<2x1x1xf32>
    tpu.vector_store %arg6[%c0_29, %c0_30, %c0_31], %17 {strides = array<i32>} : memref<2x1x1xf32, #tpu.memory_space<vmem>>, vector<2x1x1xf32>,
    %c0_i32_32 = arith.constant 0 : i32
    %36 = arith.cmpi eq, %arg1, %c0_i32_32 : i32
    %37 = arith.extui %36 : i1 to i32
    %c0_i32_33 = arith.constant 0 : i32
    %38 = arith.cmpi ne, %37, %c0_i32_33 : i32
    scf.if %38 {
      %c0_34 = arith.constant 0 : index
      %c0_35 = arith.constant 0 : index
      %c0_36 = arith.constant 0 : index
      %39 = vector.load %arg7[%c0_34, %c0_35, %c0_36] : memref<2x1x1xf32, #tpu.memory_space<vmem>>, vector<2x1x1xf32>
      %40 = tpu.reciprocal %39 {approx = true} : vector<2x1x1xf32> -> vector<2x1x1xf32>
      %41 = arith.mulf %39, %40 : vector<2x1x1xf32>
      %cst_37 = arith.constant 2.000000e+00 : f32
      %42 = vector.broadcast %cst_37 : f32 to vector<2x1x1xf32>
      %43 = arith.subf %42, %41 : vector<2x1x1xf32>
      %44 = arith.mulf %40, %43 : vector<2x1x1xf32>
      %c0_38 = arith.constant 0 : index
      %c0_39 = arith.constant 0 : index
      %c0_40 = arith.constant 0 : index
      %45 = vector.load %arg8[%c0_38, %c0_39, %c0_40] : memref<2x1x32xf32, #tpu.memory_space<vmem>>, vector<2x1x32xf32>
      %46 = vector.broadcast %44 : vector<2x1x1xf32> to vector<2x1x32xf32>
      %47 = arith.mulf %45, %46 : vector<2x1x32xf32>
      %c0_41 = arith.constant 0 : index
      %c0_42 = arith.constant 0 : index
      %c0_43 = arith.constant 0 : index
      %48 = vector.load %arg5[%c0_41, %c0_42, %c0_43] : memref<2x1x32xf32, #tpu.memory_space<vmem>>, vector<2x1x32xf32>
      tpu.vector_store %arg5[%c0_41, %c0_42, %c0_43], %47 {strides = array<i32>} : memref<2x1x32xf32, #tpu.memory_space<vmem>>, vector<2x1x32xf32>,
    } else {
    }
    return
  }
  func.func @transform_0(%arg0: i32, %arg1: i32) -> (i32, i32, i32) {
    %c0_i32 = arith.constant 0 : i32
    %c0_i32_0 = arith.constant 0 : i32
    return %arg0, %arg1, %c0_i32 : i32, i32, i32
  }
  func.func @transform_1(%arg0: i32, %arg1: i32) -> (i32, i32, i32) {
    %c0_i32 = arith.constant 0 : i32
    %c0_i32_0 = arith.constant 0 : i32
    return %arg0, %c0_i32, %arg1 : i32, i32, i32
  }
  func.func @transform_2(%arg0: i32, %arg1: i32) -> (i32, i32, i32) {
    %c0_i32 = arith.constant 0 : i32
    %c0_i32_0 = arith.constant 0 : i32
    %c0_i32_1 = arith.constant 0 : i32
    %c0_i32_2 = arith.constant 0 : i32
    return %c0_i32, %c0_i32_0, %c0_i32_1 : i32, i32, i32
  }
  func.func @transform_3(%arg0: i32, %arg1: i32) -> (i32, i32, i32) {
    %c0_i32 = arith.constant 0 : i32
    %c0_i32_0 = arith.constant 0 : i32
    %c0_i32_1 = arith.constant 0 : i32
    return %arg0, %c0_i32, %c0_i32_0 : i32, i32, i32
  }
}

</mosaic_0001>

<llo_original>
// kernel: tpu_custom_call.1
$region0: #{tpu_custom_call.1}
  #allocation0 [shape = 'u32[]', space=smem, size = 0x4, offset = 0x4, fixed_abs, tag = 'smem constant byte address 0x4 - core index']
  #allocation1 [shape = 'u32[72,128]{1,0:T(1,128)}', space=vmem, size = 0x9000, scoped, tag = 'internal scratch']
  #allocation2 [shape = 'f32[2,1,1]{2,1,0:T(1,128)}', space=vmem, size = 0x400, scoped, tag = 'scratch operand']
  #allocation3 [shape = 'f32[2,1,1]{2,1,0:T(1,128)}', space=vmem, size = 0x400, scoped, tag = 'scratch operand']
  #allocation4 [shape = 'f32[2,1,32]{2,1,0:T(1,128)}', space=vmem, size = 0x400, scoped, tag = 'scratch operand']
  %s0 = inlined_call_operand.hbm [shape: f32[2,8,32], index: 0, kind: input, shape index: {}]
  %s1 = inlined_call_operand.hbm [shape: f32[2,1,8], index: 1, kind: input, shape index: {}]
  %s2 = inlined_call_operand.vmem [shape: f32[1,1,32], index: 2, kind: input, shape index: {}]
  %s3 = inlined_call_operand.hbm [shape: f32[2,1,32], index: 3, kind: output, shape index: {}]
  %s4 = sld [smem:[#allocation0]]
  $region38: #{tpu_custom_call.1} parent=0
    _
  %s6 = ssub.s32 1, %s4
  %s7 = scalar_select 0, %s6, %s4
  $region1: #{tpu_custom_call.1} parent=0
    #allocation5 [shape = 'u8[8192]{0}', space=vmem, size = 0x2000, scoped, tag = 'input window, operand 0, single buffered']
    #allocation6 [shape = 's32[1]{0}', space=sflag, size = 0x4, scoped, tag = 'scoped memory for tpu_custom_call.1']
    #allocation7 [shape = 's32[1]{0}', space=sflag, size = 0x4, scoped, tag = 'scoped memory for tpu_custom_call.1']
    #allocation8 [shape = 'u8[1024]{0}', space=vmem, size = 0x400, scoped, tag = 'input window, operand 1, single buffered']
    #allocation9 [shape = 's32[1]{0}', space=sflag, size = 0x4, scoped, tag = 'scoped memory for tpu_custom_call.1']
    #allocation10 [shape = 'u8[1024]{0}', space=vmem, size = 0x400, scoped, tag = 'output window, operand 0, single buffered']
    %8 = vsyncpa [#allocation6], 0
    %9 = vsyncpa [#allocation9], 0
    %10 = vsyncpa [#allocation7], 0
    // Predicated region
    $region2: #{tpu_custom_call.1} parent=1 // pred_check
      _
    $region3: #{tpu_custom_call.1} parent=1 // pred_check_branch
      %12 = sbr.rel (0) target = $region5
    $region4: #{tpu_custom_call.1} parent=1 // pred_region
      %14 = vsyncadd [#allocation6], 0
      %s15 = sshll.u32 %s0, 4
      %s16 = int_to_ptr.hbm [resolvable:$true] %s15
      %s17 = sshll.u32 [#allocation5], 4
      %s18 = int_to_ptr.vmem [resolvable:$true] %s17
      %23 = dma.hbm_to_vmem [thread:$0]  %s16, 256, %s18, [#allocation6], 128, 128, 8
    $region5: #{tpu_custom_call.1} parent=1 // pred_fallthru
      _
    // Predicated region
    $region6: #{tpu_custom_call.1} parent=1 // pred_check
      _
    $region7: #{tpu_custom_call.1} parent=1 // pred_check_branch
      %25 = sbr.rel (0) target = $region9
    $region8: #{tpu_custom_call.1} parent=1 // pred_region
      %27 = vsyncadd [#allocation9], 0
      %s28 = sshll.u32 %s1, 4
      %s29 = int_to_ptr.hbm [resolvable:$true] %s28
      %s30 = sshll.u32 [#allocation8], 4
      %s31 = int_to_ptr.vmem [resolvable:$true] %s30
      %36 = dma.hbm_to_vmem [thread:$0]  %s29, 32, %s31, [#allocation9], 16, 16, 1
    $region9: #{tpu_custom_call.1} parent=1 // pred_fallthru
      _
    // Predicated region
    $region10: #{tpu_custom_call.1} parent=1 // pred_check
      _
    $region11: #{tpu_custom_call.1} parent=1 // pred_check_branch
      %38 = sbr.rel (0) target = $region13
    $region12: #{tpu_custom_call.1} parent=1 // pred_region
      _
    $region13: #{tpu_custom_call.1} parent=1 // pred_fallthru
      _
    // Predicated region
    $region14: #{tpu_custom_call.1} parent=1 // pred_check
      _
    $region15: #{tpu_custom_call.1} parent=1 // pred_check_branch
      %40 = sbr.rel (0) target = $region17
    $region16: #{tpu_custom_call.1} parent=1 // pred_region
      %42 = dma.done [#allocation6], 256
    $region17: #{tpu_custom_call.1} parent=1 // pred_fallthru
      _
    // Predicated region
    $region18: #{tpu_custom_call.1} parent=1 // pred_check
      _
    $region19: #{tpu_custom_call.1} parent=1 // pred_check_branch
      %44 = sbr.rel (0) target = $region21
    $region20: #{tpu_custom_call.1} parent=1 // pred_region
      %46 = dma.done [#allocation9], 32
    $region21: #{tpu_custom_call.1} parent=1 // pred_fallthru
      _
    %p47 = scmp.eq.s32.totalorder 0, 0
    // Predicated region
    $region22: #{tpu_custom_call.1} parent=1 // pred_check
      %p48 = pneg %p47
    $region23: #{tpu_custom_call.1} parent=1 // pred_check_branch
      %50 = sbr.rel (%p48) target = $region25
    $region24: #{tpu_custom_call.1} parent=1 // pred_region
      %vm51 = vcmask 0
      %52 = vst.msk [vmem:[#allocation2] sm:$0x1] %vm51, -inf
      %53 = vst.msk [vmem:[#allocation2 + $0x1] sm:$0x1] %vm51, -inf
      %54 = vst.msk [vmem:[#allocation3] sm:$0x1] %vm51, 0.0
      %55 = vst.msk [vmem:[#allocation3 + $0x1] sm:$0x1] %vm51, 0.0
      %vm56 = vcmask 253952
      %57 = vst.msk [vmem:[#allocation4] sm:$0x1] %vm56, 0.0
      %58 = vst.msk [vmem:[#allocation4 + $0x1] sm:$0x1] %vm56, 0.0
    $region25: #{tpu_custom_call.1} parent=1 // pred_fallthru
      _
    %v59 = vld [vmem:[#allocation5] sm:$0xff]
    %v60 = vld [vmem:[#allocation5 + $0x8] sm:$0xff]
    %v61 = vld [vmem:[#allocation8] sm:$0x1]
    %v62 = vld [vmem:[#allocation8 + $0x1] sm:$0x1]
    %v63 = vld [vmem:[%s2] sm:$0x1]
    %v64 = vsub.f32 1.0, %v61
    %v65 = vsub.f32 1.0, %v62
    %v66 = vmul.f32 %v64, -1e+30
    %v67 = vmul.f32 %v65, -1e+30
    %vm68 = vcmask 261120
    %v70 = vsel %vm68, %v63, 0
    %v73 = vsel %vm68, %v59, 0
    %75 = vmatpush.xpose.msra.mxu0 0.0
    %76 = vmatpush.xpose.msra.mxu0 0.0
    %77 = vmatpush.xpose.msra.mxu0 0.0
    %78 = vmatpush.xpose.msra.mxu0 0.0
    %79 = vmatpush.xpose.msra.mxu0 0.0
    %80 = vmatpush.xpose.msra.mxu0 0.0
    %81 = vmatpush.xpose.msra.mxu0 0.0
    %82 = vmatpush.xpose.msra.mxu0 0.0
    %83 = vmatpush.xpose.msra.mxu0 0.0
    %84 = vmatpush.xpose.msra.mxu0 0.0
    %85 = vmatpush.xpose.msra.mxu0 0.0
    %86 = vmatpush.xpose.msra.mxu0 0.0
    %87 = vmatpush.xpose.msra.mxu0 0.0
    %88 = vmatpush.xpose.msra.mxu0 0.0
    %89 = vmatpush.xpose.msra.mxu0 0.0
    %90 = vmatpush.xpose.msra.mxu0 %v73
    %91 = vmatmul.f32.gmra.mxu0 %v70
    %v92 = vpop.f32.mrf.mxu0
    %v93 = vadd.f32 %v66, %v92
    %94 = vdwg.mxu0
    %v96 = vsel %vm68, %v60, 0
    %98 = vmatpush.xpose.msra.mxu0 0.0
    %99 = vmatpush.xpose.msra.mxu0 0.0
    %100 = vmatpush.xpose.msra.mxu0 0.0
    %101 = vmatpush.xpose.msra.mxu0 0.0
    %102 = vmatpush.xpose.msra.mxu0 0.0
    %103 = vmatpush.xpose.msra.mxu0 0.0
    %104 = vmatpush.xpose.msra.mxu0 0.0
    %105 = vmatpush.xpose.msra.mxu0 0.0
    %106 = vmatpush.xpose.msra.mxu0 0.0
    %107 = vmatpush.xpose.msra.mxu0 0.0
    %108 = vmatpush.xpose.msra.mxu0 0.0
    %109 = vmatpush.xpose.msra.mxu0 0.0
    %110 = vmatpush.xpose.msra.mxu0 0.0
    %111 = vmatpush.xpose.msra.mxu0 0.0
    %112 = vmatpush.xpose.msra.mxu0 0.0
    %113 = vmatpush.xpose.msra.mxu0 %v96
    %114 = vmatmul.f32.gmra.mxu0 %v70
    %v115 = vpop.f32.mrf.mxu0
    %v116 = vadd.f32 %v67, %v115
    %117 = vdwg.mxu0
    %v118 = vld [vmem:[#allocation2] sm:$0x1]
    %v119 = vld [vmem:[#allocation2 + $0x1] sm:$0x1]
    %vm120 = vcmask 57344
    %v121 = vsel %vm120, %v93, -inf
    %122 = vmax.xlane.f32.xlu0 %v121
    %v123 = vpop.xlane.xlu0 %122
    %v124 = vsel %vm120, %v116, -inf
    %125 = vmax.xlane.f32.xlu0 %v124
    %v126 = vpop.xlane.xlu0 %125
    %v127 = vmax.f32 %v118, %v123
    %v128 = vmax.f32 %v119, %v126
    %v129 = vsub.f32 %v118, %v127
    %v130 = vsub.f32 %v119, %v128
    %v131 = vmul.f32 %v129, 1.442695
    %v132 = vpow.pop %v131
    %v133 = vmul.f32 %v130, 1.442695
    %v134 = vpow.pop %v133
    %136 = vset.pattern.permute.xlu0 0
    %137 = vperm.xlu0 %136, %v127
    %v138 = vpop.permute.xlu0 %137
    %v140 = vperm.slane %v138, 0
    %142 = vset.pattern.permute.xlu0 0
    %143 = vperm.xlu0 %142, %v128
    %v144 = vpop.permute.xlu0 %143
    %v146 = vperm.slane %v144, 0
    %v147 = vsub.f32 %v93, %v140
    %v148 = vsub.f32 %v116, %v146
    %v149 = vmul.f32 %v147, 1.442695
    %v150 = vpow.pop %v149
    %v151 = vmul.f32 %v148, 1.442695
    %v152 = vpow.pop %v151
    %v153 = vld [vmem:[#allocation3] sm:$0x1]
    %v154 = vld [vmem:[#allocation3 + $0x1] sm:$0x1]
    %v155 = vmul.f32 %v132, %v153
    %v156 = vmul.f32 %v134, %v154
    %v157 = vsel %vm120, %v150, 0.0
    %158 = vadd.xlane.f32.xlu0 %v157
    %v159 = vpop.xlane.xlu0 %158
    %v160 = vsel %vm120, %v152, 0.0
    %161 = vadd.xlane.f32.xlu0 %v160
    %v162 = vpop.xlane.xlu0 %161
    %v163 = vadd.f32 %v155, %v159
    %v164 = vadd.f32 %v156, %v162
    %vm165 = vcmask 0
    %166 = vst.msk [vmem:[#allocation3] sm:$0x1] %vm165, %v163
    %167 = vst.msk [vmem:[#allocation3 + $0x1] sm:$0x1] %vm165, %v164
    %v168 = vld [vmem:[#allocation4] sm:$0x1]
    %v169 = vld [vmem:[#allocation4 + $0x1] sm:$0x1]
    %171 = vset.pattern.permute.xlu0 0
    %172 = vperm.xlu0 %171, %v132
    %v173 = vpop.permute.xlu0 %172
    %v175 = vperm.slane %v173, 0
    %177 = vset.pattern.permute.xlu0 0
    %178 = vperm.xlu0 %177, %v134
    %v179 = vpop.permute.xlu0 %178
    %v181 = vperm.slane %v179, 0
    %v182 = vmul.f32 %v175, %v168
    %v183 = vmul.f32 %v181, %v169
    %vm184 = vcmask 64512
    %v186 = vsel %vm184, %v150, 0
    %188 = vmatpush.msra.mxu0 0.0
    %189 = vmatpush.msra.mxu0 0.0
    %190 = vmatpush.msra.mxu0 0.0
    %191 = vmatpush.msra.mxu0 0.0
    %192 = vmatpush.msra.mxu0 0.0
    %193 = vmatpush.msra.mxu0 0.0
    %194 = vmatpush.msra.mxu0 0.0
    %195 = vmatpush.msra.mxu0 0.0
    %196 = vmatpush.msra.mxu0 0.0
    %197 = vmatpush.msra.mxu0 0.0
    %198 = vmatpush.msra.mxu0 0.0
    %199 = vmatpush.msra.mxu0 0.0
    %200 = vmatpush.msra.mxu0 0.0
    %201 = vmatpush.msra.mxu0 0.0
    %202 = vmatpush.msra.mxu0 0.0
    %203 = vmatpush.msra.mxu0 %v59
    %204 = vmatmul.f32.gmra.mxu0 %v186
    %v205 = vpop.f32.mrf.mxu0
    %v206 = vadd.f32 0.0, %v205
    %207 = vdwg.mxu0
    %v209 = vsel %vm184, %v152, 0
    %211 = vmatpush.msra.mxu0 0.0
    %212 = vmatpush.msra.mxu0 0.0
    %213 = vmatpush.msra.mxu0 0.0
    %214 = vmatpush.msra.mxu0 0.0
    %215 = vmatpush.msra.mxu0 0.0
    %216 = vmatpush.msra.mxu0 0.0
    %217 = vmatpush.msra.mxu0 0.0
    %218 = vmatpush.msra.mxu0 0.0
    %219 = vmatpush.msra.mxu0 0.0
    %220 = vmatpush.msra.mxu0 0.0
    %221 = vmatpush.msra.mxu0 0.0
    %222 = vmatpush.msra.mxu0 0.0
    %223 = vmatpush.msra.mxu0 0.0
    %224 = vmatpush.msra.mxu0 0.0
    %225 = vmatpush.msra.mxu0 0.0
    %226 = vmatpush.msra.mxu0 %v60
    %227 = vmatmul.f32.gmra.mxu0 %v209
    %v228 = vpop.f32.mrf.mxu0
    %v229 = vadd.f32 0.0, %v228
    %230 = vdwg.mxu0
    %v231 = vadd.f32 %v182, %v206
    %v232 = vadd.f32 %v183, %v229
    %vm233 = vcmask 253952
    %234 = vst.msk [vmem:[#allocation4] sm:$0x1] %vm233, %v231
    %235 = vst.msk [vmem:[#allocation4 + $0x1] sm:$0x1] %vm233, %v232
    %236 = vst.msk [vmem:[#allocation2] sm:$0x1] %vm165, %v127
    %237 = vst.msk [vmem:[#allocation2 + $0x1] sm:$0x1] %vm165, %v128
    // Predicated region
    $region26: #{tpu_custom_call.1} parent=1 // pred_check
      %p238 = pneg %p47
    $region27: #{tpu_custom_call.1} parent=1 // pred_check_branch
      %240 = sbr.rel (%p238) target = $region29
    $region28: #{tpu_custom_call.1} parent=1 // pred_region
      %v241 = vld [vmem:[#allocation3] sm:$0x1]
      %v242 = vld [vmem:[#allocation3 + $0x1] sm:$0x1]
      %v243 = vrcp.pop %v241
      %v244 = vrcp.pop %v242
      %v245 = vmul.f32 %v241, %v243
      %v246 = vmul.f32 %v242, %v244
      %v247 = vsub.f32 2.0, %v245
      %v248 = vsub.f32 2.0, %v246
      %v249 = vmul.f32 %v243, %v247
      %v250 = vmul.f32 %v244, %v248
      %v251 = vld [vmem:[#allocation4] sm:$0x1]
      %v252 = vld [vmem:[#allocation4 + $0x1] sm:$0x1]
      %254 = vset.pattern.permute.xlu0 0
      %255 = vperm.xlu0 %254, %v249
      %v256 = vpop.permute.xlu0 %255
      %v258 = vperm.slane %v256, 0
      %260 = vset.pattern.permute.xlu0 0
      %261 = vperm.xlu0 %260, %v250
      %v262 = vpop.permute.xlu0 %261
      %v264 = vperm.slane %v262, 0
      %v265 = vmul.f32 %v251, %v258
      %v266 = vmul.f32 %v252, %v264
      %267 = vst.msk [vmem:[#allocation10] sm:$0x1] %vm233, %v265
      %268 = vst.msk [vmem:[#allocation10 + $0x1] sm:$0x1] %vm233, %v266
    $region29: #{tpu_custom_call.1} parent=1 // pred_fallthru
      _
    // Predicated region
    $region30: #{tpu_custom_call.1} parent=1 // pred_check
      _
    $region31: #{tpu_custom_call.1} parent=1 // pred_check_branch
      %270 = sbr.rel (0) target = $region33
    $region32: #{tpu_custom_call.1} parent=1 // pred_region
      %272 = vsyncadd [#allocation7], 0
      %s273 = sshll.u32 [#allocation10], 4
      %s274 = int_to_ptr.vmem [resolvable:$true] %s273
      %s275 = sshll.u32 %s3, 4
      %s276 = int_to_ptr.hbm [resolvable:$true] %s275
      %281 = dma.vmem_to_hbm [thread:$0]  %s274, 32, %s276, [#allocation7], 16, 16, 1
    $region33: #{tpu_custom_call.1} parent=1 // pred_fallthru
      _
    // Predicated region
    $region34: #{tpu_custom_call.1} parent=1 // pred_check
      _
    $region35: #{tpu_custom_call.1} parent=1 // pred_check_branch
      %283 = sbr.rel (0) target = $region37
    $region36: #{tpu_custom_call.1} parent=1 // pred_region
      %285 = dma.done [#allocation7], 32
    $region37: #{tpu_custom_call.1} parent=1 // pred_fallthru
      _
    %286 = vsyncpa [#allocation6], 1
    %287 = vsyncpa [#allocation9], 1
    %288 = vsyncpa [#allocation7], 1

</llo_original>
